<compile_context>
chip_gen: v6e
topology: v6e:2x2x1
jax: 0.10.0
libtpu: 0.0.40
codegen_flags: <defaults>
</compile_context>

<pallas_src>
import jax
import jax.numpy as jnp
from jax import lax
from jax.experimental import pallas as pl
from jax.experimental.pallas import tpu as pltpu

_TARGET_X_TILE_BYTES = 2 << 20   # ~2 MiB x tile -> near HBM-roofline pipelining
_VMEM_WORKSET_TARGET = 24 << 20  # per-step working-set target, safe on v5e/v6e/v7x
_LANE = 128
_SUBLANE = 8


def _round_up(x, m):
    return ((x + m - 1) // m) * m


def _padded_2d_bytes(rows, cols, itemsize):
    # 2-D VMEM blocks are padded to (8, 128) tiles.
    return _round_up(rows, _SUBLANE) * _round_up(cols, _LANE) * itemsize


def _make_mlp_kernel(num_hidden_layers: int, final_activ: str):
    """Fused MLP kernel: [Linear+ReLU]*N -> Linear -> final_activ.

    Ref signature: x_ref, (w_i, b_i)*num_hidden_layers, w_last, b_last, out_ref.
    """

    def kernel(*refs):
        x_ref = refs[0]
        out_ref = refs[-1]
        param_refs = refs[1:-1]

        h = x_ref[...]  # (TILE_B, d_in) bf16

        # Hidden FC layers: Linear -> ReLU.
        # TODO(synk): training-mode dropout (p=0.2) not implemented; eval-mode
        # forward (identity) is reproduced instead.
        for i in range(num_hidden_layers):
            w = param_refs[2 * i][...]        # (d_in, d_out) bf16
            b = param_refs[2 * i + 1][...]    # (1, d_out) f32
            z = jnp.dot(h, w, preferred_element_type=jnp.float32) + b
            h = jnp.maximum(z, 0.0).astype(jnp.bfloat16)

        # Last FC layer (epilogue kept in f32 for accuracy).
        w_last = param_refs[-2][...]
        b_last = param_refs[-1][...]
        logits = jnp.dot(h, w_last, preferred_element_type=jnp.float32) + b_last

        if final_activ == "logsoftmax":
            m = jnp.max(logits, axis=-1, keepdims=True)
            shifted = logits - m
            lse = jnp.log(jnp.sum(jnp.exp(shifted), axis=-1, keepdims=True))
            out_ref[...] = (shifted - lse).astype(out_ref.dtype)
        else:  # 'l2norm' -> F.normalize(x, p=2, dim=-1) with eps=1e-12
            sq = jnp.sum(logits * logits, axis=-1, keepdims=True)
            inv = lax.rsqrt(jnp.maximum(sq, 1e-24))  # EUP slot; exact enough
            out_ref[...] = (logits * inv).astype(out_ref.dtype)

    return kernel


def init_params(key, token_dim, sample_size, fc_layer_dims, out_dim):
    """Init mirroring torch.nn.Linear default (uniform +-1/sqrt(fan_in)).

    Weights stored as (in_dim, out_dim) f32; biases as (1, out_dim) f32.
    """
    params = []
    last_dim = token_dim * sample_size
    dims = list(fc_layer_dims) + [out_dim]
    for d in dims:
        key, kw, kb = jax.random.split(key, 3)
        bound = 1.0 / jnp.sqrt(jnp.float32(last_dim))
        w = jax.random.uniform(kw, (last_dim, d), jnp.float32, -bound, bound)
        b = jax.random.uniform(kb, (1, d), jnp.float32, -bound, bound)
        params.append((w, b))
        last_dim = d
    return params


def traj_mlp_classifier_forward(x, params, token_dim, sample_size,
                                final_activ="logsoftmax"):
    """x: (..., sample_size, token_dim) -> (B, out_dim) f32."""
    assert final_activ in ("logsoftmax", "l2norm")
    d_in = token_dim * sample_size
    x2d = x.reshape(-1, d_in).astype(jnp.bfloat16)
    batch = x2d.shape[0]
    out_dim = params[-1][0].shape[1]
    num_hidden = len(params) - 1

    # Weights bf16 (halves HBM+VMEM traffic); biases kept f32 (added post-acc).
    flat_params = []
    for (w, b) in params:
        flat_params.append(w.astype(jnp.bfloat16))
        flat_params.append(b.astype(jnp.float32))

    # ---- Honest VMEM accounting (lane/sublane padded, double-buffered). ----
    param_resident = sum(
        2 * _padded_2d_bytes(p.shape[0], p.shape[1], p.dtype.itemsize)
        for p in flat_params)
    d_cols = _round_up(d_in, _LANE)
    o_cols = _round_up(out_dim, _LANE)
    h_cols = max((_round_up(w.shape[1], _LANE) for (w, _) in params[:-1]),
                 default=0)
    per_row_bytes = (2 * d_cols * 2      # x tile (bf16), double-buffered
                     + 2 * o_cols * 4    # out tile (f32), double-buffered
                     + h_cols * (4 + 2)  # live f32 pre-act + bf16 post-ReLU
                     + o_cols * 4)       # f32 logits

    # ---- Batch tiling: byte-targeted tiles, >= 2 grid steps when possible. --
    tile_from_x = _TARGET_X_TILE_BYTES // (d_cols * 2)
    tile_from_vmem = max(
        (_VMEM_WORKSET_TARGET - param_resident) // per_row_bytes, _SUBLANE)
    tile_b = max((min(tile_from_x, tile_from_vmem) // _SUBLANE) * _SUBLANE,
                 _SUBLANE)
    if batch >= 2 * _SUBLANE:
        # Guarantee >= 2 grid steps: v7x megacore sharding + DMA/compute overlap.
        tile_b = min(tile_b, _round_up((batch + 1) // 2, _SUBLANE))
    tile_b = min(tile_b, _round_up(batch, _SUBLANE))

    # Pad batch so every grid step is a full, aligned block (zero rows are
    # benign through ReLU / log-softmax / l2norm; sliced off below).
    padded_batch = _round_up(batch, tile_b)
    if padded_batch != batch:
        x2d = jnp.pad(x2d, ((0, padded_batch - batch), (0, 0)))
    grid = (padded_batch // tile_b,)

    vmem_needed = param_resident + tile_b * per_row_bytes
    try:
        phys_vmem = int(pltpu.get_tpu_info().vmem_capacity_bytes)
    except Exception:
        phys_vmem = 64 << 20  # conservative: v7x per-core physical VMEM
    vmem_limit = int(min(max(vmem_needed + (4 << 20), 16 << 20),
                         phys_vmem * 3 // 4))
    assert vmem_needed <= vmem_limit, (vmem_needed, vmem_limit)

    x_spec = pl.BlockSpec((tile_b, d_in), lambda i: (i, 0))
    out_spec = pl.BlockSpec((tile_b, out_dim), lambda i: (i, 0))
    # Weights/biases: whole-array blocks with constant index_map -> VMEM
    # resident across all grid steps (no re-DMA per tile).
    param_specs = [pl.BlockSpec(p.shape, lambda i: (0, 0)) for p in flat_params]

    # Advisory cost estimate so XLA schedules the call as non-zero-cost.
    dims = [d_in] + [w.shape[1] for (w, _) in params]
    flops = 2 * padded_batch * sum(dims[i] * dims[i + 1]
                                   for i in range(len(dims) - 1))
    bytes_accessed = (padded_batch * d_in * 2
                      + sum(int(p.size) * p.dtype.itemsize for p in flat_params)
                      + padded_batch * out_dim * 4)
    cost = pl.CostEstimate(flops=int(flops),
                           transcendentals=int(padded_batch * out_dim),
                           bytes_accessed=int(bytes_accessed))

    kernel = _make_mlp_kernel(num_hidden, final_activ)

    fn = pl.pallas_call(
        kernel,
        out_shape=jax.ShapeDtypeStruct((padded_batch, out_dim), jnp.float32),
        grid_spec=pltpu.PrefetchScalarGridSpec(
            num_scalar_prefetch=0,
            grid=grid,
            in_specs=[x_spec] + param_specs,
            out_specs=out_spec),
        compiler_params=pltpu.CompilerParams(
            # Batch tiles are independent -> megacore sharding on v7x (2 TCs).
            dimension_semantics=("parallel",),
            vmem_limit_bytes=vmem_limit),
        cost_estimate=cost,
    )
    out = fn(x2d, *flat_params)
    if padded_batch != batch:
        out = out[:batch]
    return out


if __name__ == "__main__":
    # Small, module-consistent shapes.
    sample_size = 8
    token_dim = 4
    fc_layer_dims = (32, 32)
    out_dim = 8

    key = jax.random.PRNGKey(0)
    kx, kp, kx2 = jax.random.split(key, 3)
    params = init_params(kp, token_dim, sample_size, fc_layer_dims, out_dim)

    # Pure-JAX reference with matching bf16 weight/activation quantization.
    def jax_ref(xv, activ):
        def _bf(v):
            return v.astype(jnp.bfloat16).astype(jnp.float32)
        h = _bf(xv.reshape(-1, token_dim * sample_size))
        for i, (w, b) in enumerate(params):
            h = h @ _bf(w) + b
            if i < len(params) - 1:
                h = _bf(jnp.maximum(h, 0.0))
        if activ == "logsoftmax":
            return jax.nn.log_softmax(h, axis=-1)
        n = jnp.sqrt(jnp.sum(h * h, axis=-1, keepdims=True))
        return h / jnp.maximum(n, 1e-12)

    # Case 1: tiny batch (single tile, padded 2 -> 8 rows), log-softmax.
    x = jax.random.normal(kx, (2, sample_size, token_dim), jnp.float32)
    out = jax.block_until_ready(
        traj_mlp_classifier_forward(x, params, token_dim, sample_size,
                                    final_activ="logsoftmax"))
    assert out.shape == (2, out_dim)
    assert jnp.allclose(out, jax_ref(x, "logsoftmax"), atol=1e-4, rtol=1e-4)
    assert jnp.allclose(jnp.sum(jnp.exp(out), axis=-1), 1.0, atol=1e-4)

    # Case 2: l2norm epilogue (rsqrt path): values match + unit row norms.
    out_l2 = jax.block_until_ready(
        traj_mlp_classifier_forward(x, params, token_dim, sample_size,
                                    final_activ="l2norm"))
    assert jnp.allclose(out_l2, jax_ref(x, "l2norm"), atol=2e-3, rtol=2e-3)
    assert jnp.allclose(jnp.sqrt(jnp.sum(out_l2 * out_l2, axis=-1)), 1.0,
                        atol=1e-3)

    # Case 3: ragged batch -> exercises zero-padding and a >= 2-step grid.
    xb = jax.random.normal(kx2, (200, sample_size, token_dim), jnp.float32)
    outb = jax.block_until_ready(
        traj_mlp_classifier_forward(xb, params, token_dim, sample_size,
                                    final_activ="logsoftmax"))
    assert outb.shape == (200, out_dim)
    assert jnp.allclose(outb, jax_ref(xb, "logsoftmax"), atol=1e-4, rtol=1e-4)

    print("KERNEL_OK")
</pallas_src>

<mosaic_0001>
module attributes {stable_mosaic.version = 11 : i64} {
  func.func @kernel(%arg0: i32, %arg1: memref<8x32xbf16, #tpu.memory_space<vmem>>, %arg2: memref<32x32xbf16, #tpu.memory_space<vmem>>, %arg3: memref<1x32xf32, #tpu.memory_space<vmem>>, %arg4: memref<32x32xbf16, #tpu.memory_space<vmem>>, %arg5: memref<1x32xf32, #tpu.memory_space<vmem>>, %arg6: memref<32x8xbf16, #tpu.memory_space<vmem>>, %arg7: memref<1x8xf32, #tpu.memory_space<vmem>>, %arg8: memref<8x8xf32, #tpu.memory_space<vmem>>) attributes {dimension_semantics = [#tpu.dimension_semantics<parallel>], iteration_bounds = array<i64: 1>, scalar_prefetch = 0 : i64, scratch_operands = 0 : i64, tpu.core_type = #tpu.core_type<tc>, window_params = [{transform_indices = @transform_0, window_bounds = array<i64: 8, 32>}, {pipeline_mode = #tpu.pipeline_mode<synchronous>, transform_indices = @transform_1, window_bounds = array<i64: 32, 32>}, {pipeline_mode = #tpu.pipeline_mode<synchronous>, transform_indices = @transform_2, window_bounds = array<i64: 1, 32>}, {pipeline_mode = #tpu.pipeline_mode<synchronous>, transform_indices = @transform_3, window_bounds = array<i64: 32, 32>}, {pipeline_mode = #tpu.pipeline_mode<synchronous>, transform_indices = @transform_4, window_bounds = array<i64: 1, 32>}, {pipeline_mode = #tpu.pipeline_mode<synchronous>, transform_indices = @transform_5, window_bounds = array<i64: 32, 8>}, {pipeline_mode = #tpu.pipeline_mode<synchronous>, transform_indices = @transform_6, window_bounds = array<i64: 1, 8>}, {transform_indices = @transform_7, window_bounds = array<i64: 8, 8>}]} {
    %c0 = arith.constant 0 : index
    %c0_0 = arith.constant 0 : index
    %0 = vector.load %arg1[%c0, %c0_0] : memref<8x32xbf16, #tpu.memory_space<vmem>>, vector<8x32xbf16>
    %c0_1 = arith.constant 0 : index
    %c0_2 = arith.constant 0 : index
    %1 = vector.load %arg2[%c0_1, %c0_2] : memref<32x32xbf16, #tpu.memory_space<vmem>>, vector<32x32xbf16>
    %c0_3 = arith.constant 0 : index
    %c0_4 = arith.constant 0 : index
    %2 = vector.load %arg3[%c0_3, %c0_4] : memref<1x32xf32, #tpu.memory_space<vmem>>, vector<1x32xf32>
    %cst = arith.constant dense<0.000000e+00> : vector<8x32xf32>
    %3 = tpu.matmul %0, %1, %cst {dimension_numbers = #tpu.dot_dimension_numbers<[1], [0], [0], [1], [0, 0, 1, 1], [], []>} : vector<8x32xbf16>, vector<32x32xbf16>, vector<8x32xf32> -> vector<8x32xf32>
    %4 = vector.broadcast %2 : vector<1x32xf32> to vector<8x32xf32>
    %5 = arith.addf %3, %4 : vector<8x32xf32>
    %cst_5 = arith.constant 0.000000e+00 : f32
    %6 = vector.broadcast %cst_5 : f32 to vector<8x32xf32>
    %7 = arith.maximumf %5, %6 : vector<8x32xf32>
    %8 = arith.truncf %7 : vector<8x32xf32> to vector<8x32xbf16>
    %c0_6 = arith.constant 0 : index
    %c0_7 = arith.constant 0 : index
    %9 = vector.load %arg4[%c0_6, %c0_7] : memref<32x32xbf16, #tpu.memory_space<vmem>>, vector<32x32xbf16>
    %c0_8 = arith.constant 0 : index
    %c0_9 = arith.constant 0 : index
    %10 = vector.load %arg5[%c0_8, %c0_9] : memref<1x32xf32, #tpu.memory_space<vmem>>, vector<1x32xf32>
    %cst_10 = arith.constant dense<0.000000e+00> : vector<8x32xf32>
    %11 = tpu.matmul %8, %9, %cst_10 {dimension_numbers = #tpu.dot_dimension_numbers<[1], [0], [0], [1], [0, 0, 1, 1], [], []>} : vector<8x32xbf16>, vector<32x32xbf16>, vector<8x32xf32> -> vector<8x32xf32>
    %12 = vector.broadcast %10 : vector<1x32xf32> to vector<8x32xf32>
    %13 = arith.addf %11, %12 : vector<8x32xf32>
    %cst_11 = arith.constant 0.000000e+00 : f32
    %14 = vector.broadcast %cst_11 : f32 to vector<8x32xf32>
    %15 = arith.maximumf %13, %14 : vector<8x32xf32>
    %16 = arith.truncf %15 : vector<8x32xf32> to vector<8x32xbf16>
    %c0_12 = arith.constant 0 : index
    %c0_13 = arith.constant 0 : index
    %17 = vector.load %arg6[%c0_12, %c0_13] : memref<32x8xbf16, #tpu.memory_space<vmem>>, vector<32x8xbf16>
    %c0_14 = arith.constant 0 : index
    %c0_15 = arith.constant 0 : index
    %18 = vector.load %arg7[%c0_14, %c0_15] : memref<1x8xf32, #tpu.memory_space<vmem>>, vector<1x8xf32>
    %cst_16 = arith.constant dense<0.000000e+00> : vector<8x8xf32>
    %19 = tpu.matmul %16, %17, %cst_16 {dimension_numbers = #tpu.dot_dimension_numbers<[1], [0], [0], [1], [0, 0, 1, 1], [], []>} : vector<8x32xbf16>, vector<32x8xbf16>, vector<8x8xf32> -> vector<8x8xf32>
    %20 = vector.broadcast %18 : vector<1x8xf32> to vector<8x8xf32>
    %21 = arith.addf %19, %20 : vector<8x8xf32>
    %cst_17 = arith.constant dense<0xFF800000> : vector<8xf32>
    %22 = vector.multi_reduction <maximumf>, %21, %cst_17 [1] : vector<8x8xf32> to vector<8xf32>
    %23 = vector.shape_cast %22 : vector<8xf32> to vector<8x1xf32>
    %24 = vector.broadcast %23 : vector<8x1xf32> to vector<8x8xf32>
    %25 = arith.subf %21, %24 : vector<8x8xf32>
    %26 = math.exp %25 : vector<8x8xf32>
    %cst_18 = arith.constant dense<0.000000e+00> : vector<8xf32>
    %27 = vector.multi_reduction <add>, %26, %cst_18 [1] : vector<8x8xf32> to vector<8xf32>
    %28 = vector.shape_cast %27 : vector<8xf32> to vector<8x1xf32>
    %29 = math.log %28 : vector<8x1xf32>
    %30 = vector.broadcast %29 : vector<8x1xf32> to vector<8x8xf32>
    %31 = arith.subf %25, %30 : vector<8x8xf32>
    %c0_19 = arith.constant 0 : index
    %c0_20 = arith.constant 0 : index
    %32 = vector.load %arg8[%c0_19, %c0_20] : memref<8x8xf32, #tpu.memory_space<vmem>>, vector<8x8xf32>
    tpu.vector_store %arg8[%c0_19, %c0_20], %31 {strides = array<i32>} : memref<8x8xf32, #tpu.memory_space<vmem>>, vector<8x8xf32>,
    return
  }
  func.func @transform_0(%arg0: i32) -> (i32, i32) {
    %c0_i32 = arith.constant 0 : i32
    %c0_i32_0 = arith.constant 0 : i32
    return %arg0, %c0_i32 : i32, i32
  }
  func.func @transform_1(%arg0: i32) -> (i32, i32) {
    %c0_i32 = arith.constant 0 : i32
    %c0_i32_0 = arith.constant 0 : i32
    %c0_i32_1 = arith.constant 0 : i32
    return %c0_i32, %c0_i32_0 : i32, i32
  }
  func.func @transform_2(%arg0: i32) -> (i32, i32) {
    %c0_i32 = arith.constant 0 : i32
    %c0_i32_0 = arith.constant 0 : i32
    %c0_i32_1 = arith.constant 0 : i32
    return %c0_i32, %c0_i32_0 : i32, i32
  }
  func.func @transform_3(%arg0: i32) -> (i32, i32) {
    %c0_i32 = arith.constant 0 : i32
    %c0_i32_0 = arith.constant 0 : i32
    %c0_i32_1 = arith.constant 0 : i32
    return %c0_i32, %c0_i32_0 : i32, i32
  }
  func.func @transform_4(%arg0: i32) -> (i32, i32) {
    %c0_i32 = arith.constant 0 : i32
    %c0_i32_0 = arith.constant 0 : i32
    %c0_i32_1 = arith.constant 0 : i32
    return %c0_i32, %c0_i32_0 : i32, i32
  }
  func.func @transform_5(%arg0: i32) -> (i32, i32) {
    %c0_i32 = arith.constant 0 : i32
    %c0_i32_0 = arith.constant 0 : i32
    %c0_i32_1 = arith.constant 0 : i32
    return %c0_i32, %c0_i32_0 : i32, i32
  }
  func.func @transform_6(%arg0: i32) -> (i32, i32) {
    %c0_i32 = arith.constant 0 : i32
    %c0_i32_0 = arith.constant 0 : i32
    %c0_i32_1 = arith.constant 0 : i32
    return %c0_i32, %c0_i32_0 : i32, i32
  }
  func.func @transform_7(%arg0: i32) -> (i32, i32) {
    %c0_i32 = arith.constant 0 : i32
    %c0_i32_0 = arith.constant 0 : i32
    return %arg0, %c0_i32 : i32, i32
  }
}

</mosaic_0001>

<llo_original>
// kernel: tpu_custom_call.1
$region0: #{tpu_custom_call.1}
  #allocation0 [shape = 'u32[]', space=smem, size = 0x4, offset = 0x4, fixed_abs, tag = 'smem constant byte address 0x4 - core index']
  #allocation1 [shape = 'u32[144,128]{1,0:T(1,128)}', space=vmem, size = 0x12000, scoped, tag = 'internal scratch']
  %s0 = inlined_call_operand.vmem [shape: bf16[8,32], index: 0, kind: input, shape index: {}]
  %s1 = inlined_call_operand.vmem [shape: bf16[32,32], index: 1, kind: input, shape index: {}]
  %s2 = inlined_call_operand.vmem [shape: f32[1,32], index: 2, kind: input, shape index: {}]
  %s3 = inlined_call_operand.hbm [shape: bf16[32,32], index: 3, kind: input, shape index: {}]
  %s4 = inlined_call_operand.vmem [shape: f32[1,32], index: 4, kind: input, shape index: {}]
  %s5 = inlined_call_operand.vmem [shape: bf16[32,8], index: 5, kind: input, shape index: {}]
  %s6 = inlined_call_operand.vmem [shape: f32[1,8], index: 6, kind: input, shape index: {}]
  %s7 = inlined_call_operand.hbm [shape: f32[8,8], index: 7, kind: output, shape index: {}]
  %s8 = sld [smem:[#allocation0]]
  $region42: #{tpu_custom_call.1} parent=0
    _
  %s10 = ssub.s32 1, %s8
  %s11 = scalar_select 0, %s10, %s8
  $region1: #{tpu_custom_call.1} parent=0
    #allocation2 [shape = 'u8[8192]{0}', space=vmem, size = 0x2000, scoped, tag = 'input window, operand 3, single buffered']
    #allocation3 [shape = 's32[1]{0}', space=sflag, size = 0x4, scoped, tag = 'scoped memory for tpu_custom_call.1']
    #allocation4 [shape = 's32[1]{0}', space=sflag, size = 0x4, scoped, tag = 'scoped memory for tpu_custom_call.1']
    #allocation5 [shape = 'u8[4096]{0}', space=vmem, size = 0x1000, scoped, tag = 'output window, operand 0, single buffered']
    %12 = vsyncpa [#allocation3], 0
    %13 = vsyncpa [#allocation4], 0
    // Predicated region
    $region2: #{tpu_custom_call.1} parent=1 // pred_check
      _
    $region3: #{tpu_custom_call.1} parent=1 // pred_check_branch
      %15 = sbr.rel (0) target = $region5
    $region4: #{tpu_custom_call.1} parent=1 // pred_region
      _
    $region5: #{tpu_custom_call.1} parent=1 // pred_fallthru
      _
    // Predicated region
    $region6: #{tpu_custom_call.1} parent=1 // pred_check
      _
    $region7: #{tpu_custom_call.1} parent=1 // pred_check_branch
      %17 = sbr.rel (0) target = $region9
    $region8: #{tpu_custom_call.1} parent=1 // pred_region
      _
    $region9: #{tpu_custom_call.1} parent=1 // pred_fallthru
      _
    // Predicated region
    $region10: #{tpu_custom_call.1} parent=1 // pred_check
      _
    $region11: #{tpu_custom_call.1} parent=1 // pred_check_branch
      %19 = sbr.rel (0) target = $region13
    $region12: #{tpu_custom_call.1} parent=1 // pred_region
      _
    $region13: #{tpu_custom_call.1} parent=1 // pred_fallthru
      _
    // Predicated region
    $region14: #{tpu_custom_call.1} parent=1 // pred_check
      _
    $region15: #{tpu_custom_call.1} parent=1 // pred_check_branch
      %21 = sbr.rel (0) target = $region17
    $region16: #{tpu_custom_call.1} parent=1 // pred_region
      %s23 = ssub.s32 256, 256
      %24 = vsyncadd [#allocation3], %s23
      %s25 = sshll.u32 [#allocation2], 4
      %s26 = int_to_ptr.vmem [resolvable:$true] %s25
      %31 = dma.hbm_to_vmem [thread:$0]  %s3, 256, %s26, [#allocation3], 64, 64, 4
    $region17: #{tpu_custom_call.1} parent=1 // pred_fallthru
      _
    // Predicated region
    $region18: #{tpu_custom_call.1} parent=1 // pred_check
      _
    $region19: #{tpu_custom_call.1} parent=1 // pred_check_branch
      %33 = sbr.rel (0) target = $region21
    $region20: #{tpu_custom_call.1} parent=1 // pred_region
      _
    $region21: #{tpu_custom_call.1} parent=1 // pred_fallthru
      _
    // Predicated region
    $region22: #{tpu_custom_call.1} parent=1 // pred_check
      _
    $region23: #{tpu_custom_call.1} parent=1 // pred_check_branch
      %35 = sbr.rel (0) target = $region25
    $region24: #{tpu_custom_call.1} parent=1 // pred_region
      _
    $region25: #{tpu_custom_call.1} parent=1 // pred_fallthru
      _
    // Predicated region
    $region26: #{tpu_custom_call.1} parent=1 // pred_check
      _
    $region27: #{tpu_custom_call.1} parent=1 // pred_check_branch
      %37 = sbr.rel (0) target = $region29
    $region28: #{tpu_custom_call.1} parent=1 // pred_region
      _
    $region29: #{tpu_custom_call.1} parent=1 // pred_fallthru
      _
    // Predicated region
    $region30: #{tpu_custom_call.1} parent=1 // pred_check
      _
    $region31: #{tpu_custom_call.1} parent=1 // pred_check_branch
      %39 = sbr.rel (0) target = $region33
    $region32: #{tpu_custom_call.1} parent=1 // pred_region
      %40 = dma.done [#allocation3], 256
    $region33: #{tpu_custom_call.1} parent=1 // pred_fallthru
      _
    %v42 = vld [vmem:[%s0] sm:$0xf]
    %v43 = vld [vmem:[%s1] sm:$0xf]
    %v44 = vld [vmem:[%s1 + $0x4] sm:$0xf]
    %v45 = vld [vmem:[%s1 + $0x8] sm:$0xf]
    %v46 = vld [vmem:[%s1 + $0xc] sm:$0xf]
    %v47 = vld [vmem:[%s2] sm:$0x1]
    %v49 = vlaneseq
    %v50 = vshrl.u32 %v49, 7
    %v51 = vsub.s32 0, %v50
    %v52 = vrot.slane %v47, %v51
    %v58 = vunpack.c.l.b16 %v43
    %v59 = vunpack.c.l.b16 %v44
    %v60 = vunpack.c.l.b16 %v45
    %v61 = vunpack.c.l.b16 %v46
    %v62 = vpack.c.b16 %v59, %v58
    %v63 = vpack.c.b16 %v61, %v60
    %vm66 = vcmask 261120
    %v68 = vsel %vm66, %v42, 0
    %70 = vmatprep.subr.bf16.mxu0 0
    %71 = vmatpush1.bf16.msra.mxu0 0
    %72 = vmatprep.subr.bf16.mxu0 0
    %73 = vmatpush1.bf16.msra.mxu0 0
    %74 = vmatprep.subr.bf16.mxu0 0
    %75 = vmatpush1.bf16.msra.mxu0 0
    %76 = vmatprep.subr.bf16.mxu0 0
    %77 = vmatpush1.bf16.msra.mxu0 0
    %78 = vmatprep.subr.bf16.mxu0 0
    %79 = vmatpush1.bf16.msra.mxu0 0
    %80 = vmatprep.subr.bf16.mxu0 0
    %81 = vmatpush1.bf16.msra.mxu0 0
    %82 = vmatprep.subr.bf16.mxu0 0
    %83 = vmatpush1.bf16.msra.mxu0 %v63
    %84 = vmatprep.subr.bf16.mxu0 0
    %85 = vmatpush1.bf16.msra.mxu0 %v62
    %86 = vmatprep.subr.bf16.mxu0 0
    %87 = vmatpush2.bf16.msra.mxu0 0
    %88 = vmatprep.subr.bf16.mxu0 0
    %89 = vmatpush2.bf16.msra.mxu0 0
    %90 = vmatprep.subr.bf16.mxu0 0
    %91 = vmatpush2.bf16.msra.mxu0 0
    %92 = vmatprep.subr.bf16.mxu0 0
    %93 = vmatpush2.bf16.msra.mxu0 0
    %94 = vmatprep.subr.bf16.mxu0 0
    %95 = vmatpush2.bf16.msra.mxu0 0
    %96 = vmatprep.subr.bf16.mxu0 0
    %97 = vmatpush2.bf16.msra.mxu0 0
    %98 = vmatprep.subr.bf16.mxu0 0
    %99 = vmatpush2.bf16.msra.mxu0 0
    %100 = vmatprep.subr.bf16.mxu0 0
    %101 = vmatpush2.bf16.msra.mxu0 0
    %102 = vmatprep.mubr.bf16.mxu0 0
    %103 = vmatmul.mubr.bf16.gmra.mxu0 %v68
    %v104 = vpop.f32.mrf.mxu0
    %v105 = vadd.f32 %v52, %v104
    %v106 = vpop.f32.mrf.mxu0
    %v107 = vpop.f32.mrf.mxu0
    %v108 = vpop.f32.mrf.mxu0
    %109 = vdwg.mxu0
    %v110 = vmax.f32 %v105, 0.0
    %v111 = vpack.c.bf16 %v110, %v110
    %v112 = vld [vmem:[#allocation2] sm:$0xf]
    %v113 = vld [vmem:[#allocation2 + $0x4] sm:$0xf]
    %v114 = vld [vmem:[#allocation2 + $0x8] sm:$0xf]
    %v115 = vld [vmem:[#allocation2 + $0xc] sm:$0xf]
    %v116 = vld [vmem:[%s4] sm:$0x1]
    %v118 = vlaneseq
    %v119 = vshrl.u32 %v118, 7
    %v120 = vsub.s32 0, %v119
    %v121 = vrot.slane %v116, %v120
    %v127 = vunpack.c.l.b16 %v112
    %v128 = vunpack.c.l.b16 %v113
    %v129 = vunpack.c.l.b16 %v114
    %v130 = vunpack.c.l.b16 %v115
    %v131 = vpack.c.b16 %v128, %v127
    %v132 = vpack.c.b16 %v130, %v129
    %v136 = vsel %vm66, %v111, 0
    %138 = vmatprep.subr.bf16.mxu0 0
    %139 = vmatpush1.bf16.msra.mxu0 0
    %140 = vmatprep.subr.bf16.mxu0 0
    %141 = vmatpush1.bf16.msra.mxu0 0
    %142 = vmatprep.subr.bf16.mxu0 0
    %143 = vmatpush1.bf16.msra.mxu0 0
    %144 = vmatprep.subr.bf16.mxu0 0
    %145 = vmatpush1.bf16.msra.mxu0 0
    %146 = vmatprep.subr.bf16.mxu0 0
    %147 = vmatpush1.bf16.msra.mxu0 0
    %148 = vmatprep.subr.bf16.mxu0 0
    %149 = vmatpush1.bf16.msra.mxu0 0
    %150 = vmatprep.subr.bf16.mxu0 0
    %151 = vmatpush1.bf16.msra.mxu0 %v132
    %152 = vmatprep.subr.bf16.mxu0 0
    %153 = vmatpush1.bf16.msra.mxu0 %v131
    %154 = vmatprep.subr.bf16.mxu0 0
    %155 = vmatpush2.bf16.msra.mxu0 0
    %156 = vmatprep.subr.bf16.mxu0 0
    %157 = vmatpush2.bf16.msra.mxu0 0
    %158 = vmatprep.subr.bf16.mxu0 0
    %159 = vmatpush2.bf16.msra.mxu0 0
    %160 = vmatprep.subr.bf16.mxu0 0
    %161 = vmatpush2.bf16.msra.mxu0 0
    %162 = vmatprep.subr.bf16.mxu0 0
    %163 = vmatpush2.bf16.msra.mxu0 0
    %164 = vmatprep.subr.bf16.mxu0 0
    %165 = vmatpush2.bf16.msra.mxu0 0
    %166 = vmatprep.subr.bf16.mxu0 0
    %167 = vmatpush2.bf16.msra.mxu0 0
    %168 = vmatprep.subr.bf16.mxu0 0
    %169 = vmatpush2.bf16.msra.mxu0 0
    %170 = vmatprep.mubr.bf16.mxu0 0
    %171 = vmatmul.mubr.bf16.gmra.mxu0 %v136
    %v172 = vpop.f32.mrf.mxu0
    %v173 = vadd.f32 %v121, %v172
    %v174 = vpop.f32.mrf.mxu0
    %v175 = vpop.f32.mrf.mxu0
    %v176 = vpop.f32.mrf.mxu0
    %177 = vdwg.mxu0
    %v178 = vmax.f32 %v173, 0.0
    %v179 = vpack.c.bf16 %v178, %v178
    %v180 = vld [vmem:[%s5] sm:$0xf]
    %v181 = vld [vmem:[%s5 + $0x4] sm:$0xf]
    %v182 = vld [vmem:[%s5 + $0x8] sm:$0xf]
    %v183 = vld [vmem:[%s5 + $0xc] sm:$0xf]
    %v184 = vld [vmem:[%s6] sm:$0x1]
    %v186 = vlaneseq
    %v187 = vshrl.u32 %v186, 7
    %v188 = vsub.s32 0, %v187
    %v189 = vrot.slane %v184, %v188
    %v195 = vunpack.c.l.b16 %v180
    %v196 = vunpack.c.l.b16 %v181
    %v197 = vunpack.c.l.b16 %v182
    %v198 = vunpack.c.l.b16 %v183
    %v199 = vpack.c.b16 %v196, %v195
    %v200 = vpack.c.b16 %v198, %v197
    %v204 = vsel %vm66, %v179, 0
    %206 = vmatprep.subr.bf16.mxu0 0
    %207 = vmatpush1.bf16.msra.mxu0 0
    %208 = vmatprep.subr.bf16.mxu0 0
    %209 = vmatpush1.bf16.msra.mxu0 0
    %210 = vmatprep.subr.bf16.mxu0 0
    %211 = vmatpush1.bf16.msra.mxu0 0
    %212 = vmatprep.subr.bf16.mxu0 0
    %213 = vmatpush1.bf16.msra.mxu0 0
    %214 = vmatprep.subr.bf16.mxu0 0
    %215 = vmatpush1.bf16.msra.mxu0 0
    %216 = vmatprep.subr.bf16.mxu0 0
    %217 = vmatpush1.bf16.msra.mxu0 0
    %218 = vmatprep.subr.bf16.mxu0 0
    %219 = vmatpush1.bf16.msra.mxu0 %v200
    %220 = vmatprep.subr.bf16.mxu0 0
    %221 = vmatpush1.bf16.msra.mxu0 %v199
    %222 = vmatprep.subr.bf16.mxu0 0
    %223 = vmatpush2.bf16.msra.mxu0 0
    %224 = vmatprep.subr.bf16.mxu0 0
    %225 = vmatpush2.bf16.msra.mxu0 0
    %226 = vmatprep.subr.bf16.mxu0 0
    %227 = vmatpush2.bf16.msra.mxu0 0
    %228 = vmatprep.subr.bf16.mxu0 0
    %229 = vmatpush2.bf16.msra.mxu0 0
    %230 = vmatprep.subr.bf16.mxu0 0
    %231 = vmatpush2.bf16.msra.mxu0 0
    %232 = vmatprep.subr.bf16.mxu0 0
    %233 = vmatpush2.bf16.msra.mxu0 0
    %234 = vmatprep.subr.bf16.mxu0 0
    %235 = vmatpush2.bf16.msra.mxu0 0
    %236 = vmatprep.subr.bf16.mxu0 0
    %237 = vmatpush2.bf16.msra.mxu0 0
    %238 = vmatprep.mubr.bf16.mxu0 0
    %239 = vmatmul.mubr.bf16.gmra.mxu0 %v204
    %v240 = vpop.f32.mrf.mxu0
    %v241 = vadd.f32 %v189, %v240
    %v242 = vpop.f32.mrf.mxu0
    %v243 = vpop.f32.mrf.mxu0
    %v244 = vpop.f32.mrf.mxu0
    %245 = vdwg.mxu0
    %vm246 = vcmask 64512
    %v247 = vsel %vm246, %v241, -inf
    %248 = vmax.xlane.f32.xlu0 %v247
    %v249 = vpop.xlane.xlu0 %248
    %v250 = vsub.f32 %v241, %v249
    %v251 = vmul.f32 %v250, 1.442695
    %v252 = vpow.pop %v251
    %v253 = vsel %vm246, %v252, 0.0
    %254 = vadd.xlane.f32.xlu0 %v253
    %v255 = vpop.xlane.xlu0 %254
    %v256 = vlog2.pop %v255
    %v257 = vmul.f32 %v256, 0.6931472
    %v258 = vsub.f32 %v250, %v257
    %259 = vst.msk [vmem:[#allocation5] sm:$0xff] %vm246, %v258
    // Predicated region
    $region34: #{tpu_custom_call.1} parent=1 // pred_check
      _
    $region35: #{tpu_custom_call.1} parent=1 // pred_check_branch
      %261 = sbr.rel (0) target = $region37
    $region36: #{tpu_custom_call.1} parent=1 // pred_region
      %s263 = ssub.s32 128, 128
      %264 = vsyncadd [#allocation4], %s263
      %s266 = sshll.u32 [#allocation5], 4
      %s267 = int_to_ptr.vmem [resolvable:$true] %s266
      %269 = dma.vmem_to_hbm [thread:$0]  %s267, 128, %s7, [#allocation4]
    $region37: #{tpu_custom_call.1} parent=1 // pred_fallthru
      _
    // Predicated region
    $region38: #{tpu_custom_call.1} parent=1 // pred_check
      _
    $region39: #{tpu_custom_call.1} parent=1 // pred_check_branch
      %271 = sbr.rel (0) target = $region41
    $region40: #{tpu_custom_call.1} parent=1 // pred_region
      %272 = dma.done [#allocation4], 128
    $region41: #{tpu_custom_call.1} parent=1 // pred_fallthru
      _
    %273 = vsyncpa [#allocation3], 1
    %274 = vsyncpa [#allocation4], 1

</llo_original>
